<compile_context>
chip_gen: v6e
topology: v6e:2x2x1
jax: 0.10.0
libtpu: 0.0.40
codegen_flags: <defaults>
</compile_context>

<pallas_src>
import math

import jax
import jax.numpy as jnp
from jax.experimental import pallas as pl
from jax.experimental.pallas import tpu as pltpu


def _round_up(n, m):
    return ((n + m - 1) // m) * m


def _make_kernel(p, c):
    """Kernel over a block of shape (BT, P*C, THW) -> (BT, P*(C//2), THW)."""
    half = c // 2

    def kernel(x_ref, o_ref):
        x = x_ref[...]                                   # (BT, P*C, THW)
        outs = []
        for i in range(p):                               # static sublane offsets
            xi = x[:, i * c:(i + 1) * c, :]              # (BT, C, THW)
            mean_c = jnp.mean(xi, axis=1, keepdims=True, dtype=jnp.float32)
            max_c = jnp.max(xi, axis=1, keepdims=True).astype(jnp.float32)
            att = jax.nn.sigmoid(mean_c) * jax.nn.sigmoid(max_c)
            att = (0.5 * att).astype(x.dtype)            # (BT, 1, THW)
            # (rgb*a + ir*a)/2 == (rgb + ir) * (0.5*a)
            outs.append((xi[:, :half, :] + xi[:, half:, :]) * att)
        o_ref[...] = jnp.concatenate(outs, axis=1).astype(o_ref.dtype)

    return kernel


def spatial_attention(x):
    """x: (B, C, H, W) array (NCHW, as in the PyTorch module).
    Returns (B, C//2, H, W)."""
    b, c, h, w = x.shape
    assert c % 2 == 0 and c >= 2, "channel count must be even (split in half)"
    half = c // 2
    hw = h * w
    itemsize = jnp.dtype(x.dtype).itemsize
    # Sublane packing per 32-bit row: f32 -> 8, bf16 -> 16, int8/fp8 -> 32.
    sublanes = max(8, 32 // itemsize)

    # --- image packing factor: P*C and P*(C//2) multiples of the sublane count
    p = sublanes // math.gcd(half, sublanes)
    pc = p * c
    pco = p * half

    # --- per-generation VMEM budget / scoped limit
    try:
        info = pltpu.get_tpu_info()
        vmem_cap = getattr(info, "vmem_capacity_bytes", 64 * 1024 * 1024)
    except Exception:  # not a TPU / old runtime: fall back to the v7x numbers
        vmem_cap = 64 * 1024 * 1024
    if vmem_cap >= 100 * 1024 * 1024:      # v5e / v6e: 128 MiB physical
        vmem_limit = 64 * 1024 * 1024
        budget = 36 * 1024 * 1024
    else:                                  # v7x: 64 MiB per TensorCore
        vmem_limit = 32 * 1024 * 1024
        budget = 20 * 1024 * 1024          # ~35% headroom under the limit

    x_flat = x.reshape(b, c, hw)

    # --- lane-dense HW: pad to a multiple of 128, tile if one slab won't fit
    hw_pad = _round_up(hw, 128)
    # bytes per lane column of one packed slab:
    #   double-buffered input + output blocks, the fused pre-store temporary,
    #   and padded f32 attention-map headroom.
    per_lane = itemsize * (2 * pc + 2 * pco + pco) + 3 * 8 * 4
    if per_lane * hw_pad <= budget:
        thw = hw_pad
    else:
        n_hw_tiles = pl.cdiv(per_lane * hw_pad, budget)
        thw = _round_up(pl.cdiv(hw_pad, n_hw_tiles), 128)
    hw_pad = _round_up(hw_pad, thw)
    n_hw = hw_pad // thw

    # --- slabs per block (BT): fill the budget, then keep enough grid steps
    b_img_pad = _round_up(b, p)
    n_slabs = b_img_pad // p
    bt = max(1, budget // (per_lane * thw))
    bt = min(bt, n_slabs)

    def _block_bytes(bt_):
        return itemsize * (pc + pco) * thw * bt_

    # >= ~8 total steps (overlap + even megacore split) while blocks >= ~512 KiB
    while bt > 1 and pl.cdiv(n_slabs, bt) * n_hw < 8 and \
            _block_bytes(max(1, bt // 2)) >= 512 * 1024:
        bt = max(1, bt // 2)

    n_slabs_pad = _round_up(n_slabs, bt)
    b_total = n_slabs_pad * p

    # --- pad batch / HW with zeros (per-image, per-position independence makes
    # this safe; padded outputs are sliced away below), then pack.
    if b_total != b or hw_pad != hw:
        x_flat = jnp.pad(x_flat, ((0, b_total - b), (0, 0), (0, hw_pad - hw)))
    x_packed = x_flat.reshape(n_slabs_pad, pc, hw_pad)   # free contiguous view

    grid = (n_slabs_pad // bt, n_hw)
    kernel = _make_kernel(p, c)

    out_packed = pl.pallas_call(
        kernel,
        out_shape=jax.ShapeDtypeStruct((n_slabs_pad, pco, hw_pad), x.dtype),
        grid_spec=pltpu.PrefetchScalarGridSpec(
            num_scalar_prefetch=0,
            grid=grid,
            in_specs=[pl.BlockSpec((bt, pc, thw), lambda i, j: (i, 0, j))],
            out_specs=pl.BlockSpec((bt, pco, thw), lambda i, j: (i, 0, j)),
        ),
        compiler_params=pltpu.CompilerParams(
            dimension_semantics=("parallel", "parallel"),
            vmem_limit_bytes=vmem_limit,
        ),
        cost_estimate=pl.CostEstimate(
            flops=4 * b * c * hw,
            transcendentals=2 * b * hw,
            bytes_accessed=int(1.5 * b * c * hw * itemsize),
        ),
    )(x_packed)

    out_flat = out_packed.reshape(b_total, half, hw_pad)  # free contiguous view
    out_flat = out_flat[:b, :, :hw]
    return out_flat.reshape(b, half, h, w)


def spatial_attention_ref(x):
    """Pure-JAX reference mirroring the PyTorch forward exactly."""
    b, c, h, w = x.shape
    cap = jax.nn.sigmoid(jnp.mean(x, axis=1, keepdims=True))
    cmp_ = jax.nn.sigmoid(jnp.max(x, axis=1, keepdims=True))
    y = x * cap * cmp_
    rgb, ir = y[:, : c // 2], y[:, c // 2:]
    return (rgb + ir) / 2


if __name__ == "__main__":
    key = jax.random.PRNGKey(0)

    # Shapes implied by the module (concatenated RGB+IR feature maps).
    B, C, H, W = 2, 4, 16, 16
    x = jax.random.normal(key, (B, C, H, W), dtype=jnp.float32)

    out = jax.block_until_ready(spatial_attention(x))
    ref = spatial_attention_ref(x)
    assert out.shape == (B, C // 2, H, W), out.shape
    assert jnp.allclose(out, ref, atol=1e-5, rtol=1e-5), \
        float(jnp.max(jnp.abs(out - ref)))

    # Second shape exercising the HW (lane) padding path (14x14 = 196 lanes).
    x2 = jax.random.normal(jax.random.PRNGKey(1), (2, 4, 14, 14), dtype=jnp.float32)
    out2 = jax.block_until_ready(spatial_attention(x2))
    ref2 = spatial_attention_ref(x2)
    assert out2.shape == ref2.shape, out2.shape
    assert jnp.allclose(out2, ref2, atol=1e-5, rtol=1e-5), \
        float(jnp.max(jnp.abs(out2 - ref2)))

    print("KERNEL_OK")
</pallas_src>

<mosaic_0001>
module attributes {stable_mosaic.version = 11 : i64} {
  func.func @kernel(%arg0: i32, %arg1: i32, %arg2: memref<1x16x256xf32, #tpu.memory_space<vmem>>, %arg3: memref<1x8x256xf32, #tpu.memory_space<vmem>>) attributes {dimension_semantics = [#tpu.dimension_semantics<parallel>, #tpu.dimension_semantics<parallel>], iteration_bounds = array<i64: 1, 1>, scalar_prefetch = 0 : i64, scratch_operands = 0 : i64, tpu.core_type = #tpu.core_type<tc>, window_params = [{transform_indices = @transform_0, window_bounds = array<i64: 1, 16, 256>}, {transform_indices = @transform_1, window_bounds = array<i64: 1, 8, 256>}]} {
    %c0 = arith.constant 0 : index
    %c0_0 = arith.constant 0 : index
    %c0_1 = arith.constant 0 : index
    %0 = vector.load %arg2[%c0, %c0_0, %c0_1] : memref<1x16x256xf32, #tpu.memory_space<vmem>>, vector<1x16x256xf32>
    %1 = vector.extract_strided_slice %0 {offsets = [0, 0, 0], sizes = [1, 4, 256], strides = [1, 1, 1]} : vector<1x16x256xf32> to vector<1x4x256xf32>
    %cst = arith.constant dense<0.000000e+00> : vector<1x256xf32>
    %2 = vector.multi_reduction <add>, %1, %cst [1] : vector<1x4x256xf32> to vector<1x256xf32>
    %3 = vector.shape_cast %2 : vector<1x256xf32> to vector<1x1x256xf32>
    %cst_2 = arith.constant 4.000000e+00 : f32
    %4 = vector.broadcast %cst_2 : f32 to vector<1x1x256xf32>
    %5 = arith.divf %3, %4 : vector<1x1x256xf32>
    %cst_3 = arith.constant dense<0xFF800000> : vector<1x256xf32>
    %6 = vector.multi_reduction <maximumf>, %1, %cst_3 [1] : vector<1x4x256xf32> to vector<1x256xf32>
    %7 = vector.shape_cast %6 : vector<1x256xf32> to vector<1x1x256xf32>
    %8 = arith.negf %5 : vector<1x1x256xf32>
    %9 = math.exp %8 : vector<1x1x256xf32>
    %cst_4 = arith.constant 1.000000e+00 : f32
    %10 = vector.broadcast %cst_4 : f32 to vector<1x1x256xf32>
    %11 = arith.addf %10, %9 : vector<1x1x256xf32>
    %12 = arith.divf %10, %11 : vector<1x1x256xf32>
    %13 = arith.negf %7 : vector<1x1x256xf32>
    %14 = math.exp %13 : vector<1x1x256xf32>
    %cst_5 = arith.constant 1.000000e+00 : f32
    %15 = vector.broadcast %cst_5 : f32 to vector<1x1x256xf32>
    %16 = arith.addf %15, %14 : vector<1x1x256xf32>
    %17 = arith.divf %15, %16 : vector<1x1x256xf32>
    %18 = arith.mulf %12, %17 : vector<1x1x256xf32>
    %cst_6 = arith.constant 5.000000e-01 : f32
    %19 = vector.broadcast %cst_6 : f32 to vector<1x1x256xf32>
    %20 = arith.mulf %19, %18 : vector<1x1x256xf32>
    %21 = vector.extract_strided_slice %1 {offsets = [0, 0, 0], sizes = [1, 2, 256], strides = [1, 1, 1]} : vector<1x4x256xf32> to vector<1x2x256xf32>
    %22 = vector.extract_strided_slice %1 {offsets = [0, 2, 0], sizes = [1, 2, 256], strides = [1, 1, 1]} : vector<1x4x256xf32> to vector<1x2x256xf32>
    %23 = arith.addf %21, %22 : vector<1x2x256xf32>
    %24 = vector.broadcast %20 : vector<1x1x256xf32> to vector<1x2x256xf32>
    %25 = arith.mulf %23, %24 : vector<1x2x256xf32>
    %26 = vector.extract_strided_slice %0 {offsets = [0, 4, 0], sizes = [1, 4, 256], strides = [1, 1, 1]} : vector<1x16x256xf32> to vector<1x4x256xf32>
    %cst_7 = arith.constant dense<0.000000e+00> : vector<1x256xf32>
    %27 = vector.multi_reduction <add>, %26, %cst_7 [1] : vector<1x4x256xf32> to vector<1x256xf32>
    %28 = vector.shape_cast %27 : vector<1x256xf32> to vector<1x1x256xf32>
    %cst_8 = arith.constant 4.000000e+00 : f32
    %29 = vector.broadcast %cst_8 : f32 to vector<1x1x256xf32>
    %30 = arith.divf %28, %29 : vector<1x1x256xf32>
    %cst_9 = arith.constant dense<0xFF800000> : vector<1x256xf32>
    %31 = vector.multi_reduction <maximumf>, %26, %cst_9 [1] : vector<1x4x256xf32> to vector<1x256xf32>
    %32 = vector.shape_cast %31 : vector<1x256xf32> to vector<1x1x256xf32>
    %33 = arith.negf %30 : vector<1x1x256xf32>
    %34 = math.exp %33 : vector<1x1x256xf32>
    %cst_10 = arith.constant 1.000000e+00 : f32
    %35 = vector.broadcast %cst_10 : f32 to vector<1x1x256xf32>
    %36 = arith.addf %35, %34 : vector<1x1x256xf32>
    %37 = arith.divf %35, %36 : vector<1x1x256xf32>
    %38 = arith.negf %32 : vector<1x1x256xf32>
    %39 = math.exp %38 : vector<1x1x256xf32>
    %cst_11 = arith.constant 1.000000e+00 : f32
    %40 = vector.broadcast %cst_11 : f32 to vector<1x1x256xf32>
    %41 = arith.addf %40, %39 : vector<1x1x256xf32>
    %42 = arith.divf %40, %41 : vector<1x1x256xf32>
    %43 = arith.mulf %37, %42 : vector<1x1x256xf32>
    %cst_12 = arith.constant 5.000000e-01 : f32
    %44 = vector.broadcast %cst_12 : f32 to vector<1x1x256xf32>
    %45 = arith.mulf %44, %43 : vector<1x1x256xf32>
    %46 = vector.extract_strided_slice %26 {offsets = [0, 0, 0], sizes = [1, 2, 256], strides = [1, 1, 1]} : vector<1x4x256xf32> to vector<1x2x256xf32>
    %47 = vector.extract_strided_slice %26 {offsets = [0, 2, 0], sizes = [1, 2, 256], strides = [1, 1, 1]} : vector<1x4x256xf32> to vector<1x2x256xf32>
    %48 = arith.addf %46, %47 : vector<1x2x256xf32>
    %49 = vector.broadcast %45 : vector<1x1x256xf32> to vector<1x2x256xf32>
    %50 = arith.mulf %48, %49 : vector<1x2x256xf32>
    %51 = vector.extract_strided_slice %0 {offsets = [0, 8, 0], sizes = [1, 4, 256], strides = [1, 1, 1]} : vector<1x16x256xf32> to vector<1x4x256xf32>
    %cst_13 = arith.constant dense<0.000000e+00> : vector<1x256xf32>
    %52 = vector.multi_reduction <add>, %51, %cst_13 [1] : vector<1x4x256xf32> to vector<1x256xf32>
    %53 = vector.shape_cast %52 : vector<1x256xf32> to vector<1x1x256xf32>
    %cst_14 = arith.constant 4.000000e+00 : f32
    %54 = vector.broadcast %cst_14 : f32 to vector<1x1x256xf32>
    %55 = arith.divf %53, %54 : vector<1x1x256xf32>
    %cst_15 = arith.constant dense<0xFF800000> : vector<1x256xf32>
    %56 = vector.multi_reduction <maximumf>, %51, %cst_15 [1] : vector<1x4x256xf32> to vector<1x256xf32>
    %57 = vector.shape_cast %56 : vector<1x256xf32> to vector<1x1x256xf32>
    %58 = arith.negf %55 : vector<1x1x256xf32>
    %59 = math.exp %58 : vector<1x1x256xf32>
    %cst_16 = arith.constant 1.000000e+00 : f32
    %60 = vector.broadcast %cst_16 : f32 to vector<1x1x256xf32>
    %61 = arith.addf %60, %59 : vector<1x1x256xf32>
    %62 = arith.divf %60, %61 : vector<1x1x256xf32>
    %63 = arith.negf %57 : vector<1x1x256xf32>
    %64 = math.exp %63 : vector<1x1x256xf32>
    %cst_17 = arith.constant 1.000000e+00 : f32
    %65 = vector.broadcast %cst_17 : f32 to vector<1x1x256xf32>
    %66 = arith.addf %65, %64 : vector<1x1x256xf32>
    %67 = arith.divf %65, %66 : vector<1x1x256xf32>
    %68 = arith.mulf %62, %67 : vector<1x1x256xf32>
    %cst_18 = arith.constant 5.000000e-01 : f32
    %69 = vector.broadcast %cst_18 : f32 to vector<1x1x256xf32>
    %70 = arith.mulf %69, %68 : vector<1x1x256xf32>
    %71 = vector.extract_strided_slice %51 {offsets = [0, 0, 0], sizes = [1, 2, 256], strides = [1, 1, 1]} : vector<1x4x256xf32> to vector<1x2x256xf32>
    %72 = vector.extract_strided_slice %51 {offsets = [0, 2, 0], sizes = [1, 2, 256], strides = [1, 1, 1]} : vector<1x4x256xf32> to vector<1x2x256xf32>
    %73 = arith.addf %71, %72 : vector<1x2x256xf32>
    %74 = vector.broadcast %70 : vector<1x1x256xf32> to vector<1x2x256xf32>
    %75 = arith.mulf %73, %74 : vector<1x2x256xf32>
    %76 = vector.extract_strided_slice %0 {offsets = [0, 12, 0], sizes = [1, 4, 256], strides = [1, 1, 1]} : vector<1x16x256xf32> to vector<1x4x256xf32>
    %cst_19 = arith.constant dense<0.000000e+00> : vector<1x256xf32>
    %77 = vector.multi_reduction <add>, %76, %cst_19 [1] : vector<1x4x256xf32> to vector<1x256xf32>
    %78 = vector.shape_cast %77 : vector<1x256xf32> to vector<1x1x256xf32>
    %cst_20 = arith.constant 4.000000e+00 : f32
    %79 = vector.broadcast %cst_20 : f32 to vector<1x1x256xf32>
    %80 = arith.divf %78, %79 : vector<1x1x256xf32>
    %cst_21 = arith.constant dense<0xFF800000> : vector<1x256xf32>
    %81 = vector.multi_reduction <maximumf>, %76, %cst_21 [1] : vector<1x4x256xf32> to vector<1x256xf32>
    %82 = vector.shape_cast %81 : vector<1x256xf32> to vector<1x1x256xf32>
    %83 = arith.negf %80 : vector<1x1x256xf32>
    %84 = math.exp %83 : vector<1x1x256xf32>
    %cst_22 = arith.constant 1.000000e+00 : f32
    %85 = vector.broadcast %cst_22 : f32 to vector<1x1x256xf32>
    %86 = arith.addf %85, %84 : vector<1x1x256xf32>
    %87 = arith.divf %85, %86 : vector<1x1x256xf32>
    %88 = arith.negf %82 : vector<1x1x256xf32>
    %89 = math.exp %88 : vector<1x1x256xf32>
    %cst_23 = arith.constant 1.000000e+00 : f32
    %90 = vector.broadcast %cst_23 : f32 to vector<1x1x256xf32>
    %91 = arith.addf %90, %89 : vector<1x1x256xf32>
    %92 = arith.divf %90, %91 : vector<1x1x256xf32>
    %93 = arith.mulf %87, %92 : vector<1x1x256xf32>
    %cst_24 = arith.constant 5.000000e-01 : f32
    %94 = vector.broadcast %cst_24 : f32 to vector<1x1x256xf32>
    %95 = arith.mulf %94, %93 : vector<1x1x256xf32>
    %96 = vector.extract_strided_slice %76 {offsets = [0, 0, 0], sizes = [1, 2, 256], strides = [1, 1, 1]} : vector<1x4x256xf32> to vector<1x2x256xf32>
    %97 = vector.extract_strided_slice %76 {offsets = [0, 2, 0], sizes = [1, 2, 256], strides = [1, 1, 1]} : vector<1x4x256xf32> to vector<1x2x256xf32>
    %98 = arith.addf %96, %97 : vector<1x2x256xf32>
    %99 = vector.broadcast %95 : vector<1x1x256xf32> to vector<1x2x256xf32>
    %100 = arith.mulf %98, %99 : vector<1x2x256xf32>
    %101 = tpu.concatenate %25, %50, %75, %100 in 1 : vector<1x2x256xf32>, vector<1x2x256xf32>, vector<1x2x256xf32>, vector<1x2x256xf32> -> vector<1x8x256xf32>
    %c0_25 = arith.constant 0 : index
    %c0_26 = arith.constant 0 : index
    %c0_27 = arith.constant 0 : index
    %102 = vector.load %arg3[%c0_25, %c0_26, %c0_27] : memref<1x8x256xf32, #tpu.memory_space<vmem>>, vector<1x8x256xf32>
    tpu.vector_store %arg3[%c0_25, %c0_26, %c0_27], %101 {strides = array<i32>} : memref<1x8x256xf32, #tpu.memory_space<vmem>>, vector<1x8x256xf32>,
    return
  }
  func.func @transform_0(%arg0: i32, %arg1: i32) -> (i32, i32, i32) {
    %c0_i32 = arith.constant 0 : i32
    %c0_i32_0 = arith.constant 0 : i32
    return %arg0, %c0_i32, %arg1 : i32, i32, i32
  }
  func.func @transform_1(%arg0: i32, %arg1: i32) -> (i32, i32, i32) {
    %c0_i32 = arith.constant 0 : i32
    %c0_i32_0 = arith.constant 0 : i32
    return %arg0, %c0_i32, %arg1 : i32, i32, i32
  }
}

</mosaic_0001>

<llo_original>
// kernel: tpu_custom_call.1
$region0: #{tpu_custom_call.1}
  #allocation0 [shape = 'u32[]', space=smem, size = 0x4, offset = 0x4, fixed_abs, tag = 'smem constant byte address 0x4 - core index']
  #allocation1 [shape = 'u32[144,128]{1,0:T(1,128)}', space=vmem, size = 0x12000, scoped, tag = 'internal scratch']
  %s0 = inlined_call_operand.hbm [shape: f32[1,16,256], index: 0, kind: input, shape index: {}]
  %s1 = inlined_call_operand.hbm [shape: f32[1,8,256], index: 1, kind: output, shape index: {}]
  %s2 = sld [smem:[#allocation0]]
  $region18: #{tpu_custom_call.1} parent=0
    _
  %s4 = ssub.s32 1, %s2
  %s5 = scalar_select 0, %s4, %s2
  $region1: #{tpu_custom_call.1} parent=0
    #allocation2 [shape = 'u8[16384]{0}', space=vmem, size = 0x4000, scoped, tag = 'input window, operand 0, single buffered']
    #allocation3 [shape = 's32[1]{0}', space=sflag, size = 0x4, scoped, tag = 'scoped memory for tpu_custom_call.1']
    #allocation4 [shape = 's32[1]{0}', space=sflag, size = 0x4, scoped, tag = 'scoped memory for tpu_custom_call.1']
    #allocation5 [shape = 'u8[8192]{0}', space=vmem, size = 0x2000, scoped, tag = 'output window, operand 0, single buffered']
    %6 = vsyncpa [#allocation3], 0
    %7 = vsyncpa [#allocation4], 0
    // Predicated region
    $region2: #{tpu_custom_call.1} parent=1 // pred_check
      _
    $region3: #{tpu_custom_call.1} parent=1 // pred_check_branch
      %9 = sbr.rel (0) target = $region5
    $region4: #{tpu_custom_call.1} parent=1 // pred_region
      %s11 = ssub.s32 512, 512
      %12 = vsyncadd [#allocation3], %s11
      %s13 = sshll.u32 [#allocation2], 4
      %s14 = int_to_ptr.vmem [resolvable:$true] %s13
      %19 = dma.hbm_to_vmem [thread:$0]  %s0, 512, %s14, [#allocation3], 256, 256, 16
    $region5: #{tpu_custom_call.1} parent=1 // pred_fallthru
      _
    // Predicated region
    $region6: #{tpu_custom_call.1} parent=1 // pred_check
      _
    $region7: #{tpu_custom_call.1} parent=1 // pred_check_branch
      %21 = sbr.rel (0) target = $region9
    $region8: #{tpu_custom_call.1} parent=1 // pred_region
      %22 = dma.done [#allocation3], 512
    $region9: #{tpu_custom_call.1} parent=1 // pred_fallthru
      _
    %v23 = vld [vmem:[#allocation2] sm:$0xff]
    %v24 = vld [vmem:[#allocation2 + $0x8] sm:$0xff]
    %v25 = vld [vmem:[#allocation2 + $0x10] sm:$0xff]
    %v26 = vld [vmem:[#allocation2 + $0x18] sm:$0xff]
    %vm27 = vcmask 1043456
    %v28 = vsel %vm27, %v23, 0.0
    %v29 = vrot.slane %v28, 4
    %v30 = vadd.f32 %v28, %v29
    %v31 = vrot.slane %v30, 2
    %v32 = vadd.f32 %v30, %v31
    %v33 = vrot.slane %v32, 1
    %v34 = vadd.f32 %v32, %v33
    %v35 = vsel %vm27, %v24, 0.0
    %v36 = vrot.slane %v35, 4
    %v37 = vadd.f32 %v35, %v36
    %v38 = vrot.slane %v37, 2
    %v39 = vadd.f32 %v37, %v38
    %v40 = vrot.slane %v39, 1
    %v41 = vadd.f32 %v39, %v40
    %v42 = vrcp.pop 4.0
    %v43 = vmul.f32 %v34, %v42
    %v44 = vmul.f32 %v41, %v42
    %v45 = vsel %vm27, %v23, -inf
    %v46 = vrot.slane %v45, 4
    %v47 = vmax.f32 %v45, %v46
    %v48 = vrot.slane %v47, 2
    %v49 = vmax.f32 %v47, %v48
    %v50 = vrot.slane %v49, 1
    %v51 = vmax.f32 %v49, %v50
    %v52 = vsel %vm27, %v24, -inf
    %v53 = vrot.slane %v52, 4
    %v54 = vmax.f32 %v52, %v53
    %v55 = vrot.slane %v54, 2
    %v56 = vmax.f32 %v54, %v55
    %v57 = vrot.slane %v56, 1
    %v58 = vmax.f32 %v56, %v57
    %v59 = vxor.u32 %v43, 2147483648
    %v60 = vxor.u32 %v44, 2147483648
    %v61 = vmul.f32 %v59, 1.442695
    %v62 = vpow.pop %v61
    %v63 = vmul.f32 %v60, 1.442695
    %v64 = vpow.pop %v63
    %v65 = vadd.f32 %v62, 1.0
    %v66 = vadd.f32 %v64, 1.0
    %v67 = vrcp.pop %v65
    %v68 = vmul.f32 1.0, %v67
    %v69 = vrcp.pop %v66
    %v70 = vmul.f32 1.0, %v69
    %v71 = vxor.u32 %v51, 2147483648
    %v72 = vxor.u32 %v58, 2147483648
    %v73 = vmul.f32 %v71, 1.442695
    %v74 = vpow.pop %v73
    %v75 = vmul.f32 %v72, 1.442695
    %v76 = vpow.pop %v75
    %v77 = vadd.f32 %v74, 1.0
    %v78 = vadd.f32 %v76, 1.0
    %v79 = vrcp.pop %v77
    %v80 = vmul.f32 1.0, %v79
    %v81 = vrcp.pop %v78
    %v82 = vmul.f32 1.0, %v81
    %v83 = vmul.f32 %v68, %v80
    %v84 = vmul.f32 %v70, %v82
    %v85 = vmul.f32 %v83, 0.5
    %v86 = vmul.f32 %v84, 0.5
    %v89 = vrot.slane %v23, 2
    %v90 = vrot.slane %v24, 2
    %v93 = vadd.f32 %v23, %v89
    %v94 = vadd.f32 %v24, %v90
    %v95 = vmul.f32 %v93, %v85
    %v96 = vmul.f32 %v94, %v86
    %v97 = vrot.slane %v23, 4
    %v98 = vrot.slane %v24, 4
    %v101 = vsel %vm27, %v97, 0.0
    %v102 = vrot.slane %v101, 4
    %v103 = vadd.f32 %v101, %v102
    %v104 = vrot.slane %v103, 2
    %v105 = vadd.f32 %v103, %v104
    %v106 = vrot.slane %v105, 1
    %v107 = vadd.f32 %v105, %v106
    %v108 = vsel %vm27, %v98, 0.0
    %v109 = vrot.slane %v108, 4
    %v110 = vadd.f32 %v108, %v109
    %v111 = vrot.slane %v110, 2
    %v112 = vadd.f32 %v110, %v111
    %v113 = vrot.slane %v112, 1
    %v114 = vadd.f32 %v112, %v113
    %v115 = vmul.f32 %v107, %v42
    %v116 = vmul.f32 %v114, %v42
    %vm117 = vcmask 1047556
    %v118 = vsel %vm117, %v23, -inf
    %v119 = vrot.slane %v118, 4
    %v120 = vmax.f32 %v118, %v119
    %v121 = vrot.slane %v120, 2
    %v122 = vmax.f32 %v120, %v121
    %v123 = vrot.slane %v122, 1
    %v124 = vmax.f32 %v122, %v123
    %v125 = vsel %vm117, %v24, -inf
    %v126 = vrot.slane %v125, 4
    %v127 = vmax.f32 %v125, %v126
    %v128 = vrot.slane %v127, 2
    %v129 = vmax.f32 %v127, %v128
    %v130 = vrot.slane %v129, 1
    %v131 = vmax.f32 %v129, %v130
    %v132 = vxor.u32 %v115, 2147483648
    %v133 = vxor.u32 %v116, 2147483648
    %v134 = vmul.f32 %v132, 1.442695
    %v135 = vpow.pop %v134
    %v136 = vmul.f32 %v133, 1.442695
    %v137 = vpow.pop %v136
    %v138 = vadd.f32 %v135, 1.0
    %v139 = vadd.f32 %v137, 1.0
    %v140 = vrcp.pop %v138
    %v141 = vmul.f32 1.0, %v140
    %v142 = vrcp.pop %v139
    %v143 = vmul.f32 1.0, %v142
    %v144 = vxor.u32 %v124, 2147483648
    %v145 = vxor.u32 %v131, 2147483648
    %v146 = vmul.f32 %v144, 1.442695
    %v147 = vpow.pop %v146
    %v148 = vmul.f32 %v145, 1.442695
    %v149 = vpow.pop %v148
    %v150 = vadd.f32 %v147, 1.0
    %v151 = vadd.f32 %v149, 1.0
    %v152 = vrcp.pop %v150
    %v153 = vmul.f32 1.0, %v152
    %v154 = vrcp.pop %v151
    %v155 = vmul.f32 1.0, %v154
    %v156 = vmul.f32 %v141, %v153
    %v157 = vmul.f32 %v143, %v155
    %v158 = vmul.f32 %v156, 0.5
    %v159 = vmul.f32 %v157, 0.5
    %v160 = vmul.f32 %v93, %v158
    %v161 = vmul.f32 %v94, %v159
    %v162 = vsel %vm27, %v25, 0.0
    %v163 = vrot.slane %v162, 4
    %v164 = vadd.f32 %v162, %v163
    %v165 = vrot.slane %v164, 2
    %v166 = vadd.f32 %v164, %v165
    %v167 = vrot.slane %v166, 1
    %v168 = vadd.f32 %v166, %v167
    %v169 = vsel %vm27, %v26, 0.0
    %v170 = vrot.slane %v169, 4
    %v171 = vadd.f32 %v169, %v170
    %v172 = vrot.slane %v171, 2
    %v173 = vadd.f32 %v171, %v172
    %v174 = vrot.slane %v173, 1
    %v175 = vadd.f32 %v173, %v174
    %v176 = vmul.f32 %v168, %v42
    %v177 = vmul.f32 %v175, %v42
    %v178 = vsel %vm27, %v25, -inf
    %v179 = vrot.slane %v178, 4
    %v180 = vmax.f32 %v178, %v179
    %v181 = vrot.slane %v180, 2
    %v182 = vmax.f32 %v180, %v181
    %v183 = vrot.slane %v182, 1
    %v184 = vmax.f32 %v182, %v183
    %v185 = vsel %vm27, %v26, -inf
    %v186 = vrot.slane %v185, 4
    %v187 = vmax.f32 %v185, %v186
    %v188 = vrot.slane %v187, 2
    %v189 = vmax.f32 %v187, %v188
    %v190 = vrot.slane %v189, 1
    %v191 = vmax.f32 %v189, %v190
    %v192 = vxor.u32 %v176, 2147483648
    %v193 = vxor.u32 %v177, 2147483648
    %v194 = vmul.f32 %v192, 1.442695
    %v195 = vpow.pop %v194
    %v196 = vmul.f32 %v193, 1.442695
    %v197 = vpow.pop %v196
    %v198 = vadd.f32 %v195, 1.0
    %v199 = vadd.f32 %v197, 1.0
    %v200 = vrcp.pop %v198
    %v201 = vmul.f32 1.0, %v200
    %v202 = vrcp.pop %v199
    %v203 = vmul.f32 1.0, %v202
    %v204 = vxor.u32 %v184, 2147483648
    %v205 = vxor.u32 %v191, 2147483648
    %v206 = vmul.f32 %v204, 1.442695
    %v207 = vpow.pop %v206
    %v208 = vmul.f32 %v205, 1.442695
    %v209 = vpow.pop %v208
    %v210 = vadd.f32 %v207, 1.0
    %v211 = vadd.f32 %v209, 1.0
    %v212 = vrcp.pop %v210
    %v213 = vmul.f32 1.0, %v212
    %v214 = vrcp.pop %v211
    %v215 = vmul.f32 1.0, %v214
    %v216 = vmul.f32 %v201, %v213
    %v217 = vmul.f32 %v203, %v215
    %v218 = vmul.f32 %v216, 0.5
    %v219 = vmul.f32 %v217, 0.5
    %v222 = vrot.slane %v25, 2
    %v223 = vrot.slane %v26, 2
    %v226 = vadd.f32 %v25, %v222
    %v227 = vadd.f32 %v26, %v223
    %v228 = vmul.f32 %v226, %v218
    %v229 = vmul.f32 %v227, %v219
    %v230 = vrot.slane %v25, 4
    %v231 = vrot.slane %v26, 4
    %v234 = vsel %vm27, %v230, 0.0
    %v235 = vrot.slane %v234, 4
    %v236 = vadd.f32 %v234, %v235
    %v237 = vrot.slane %v236, 2
    %v238 = vadd.f32 %v236, %v237
    %v239 = vrot.slane %v238, 1
    %v240 = vadd.f32 %v238, %v239
    %v241 = vsel %vm27, %v231, 0.0
    %v242 = vrot.slane %v241, 4
    %v243 = vadd.f32 %v241, %v242
    %v244 = vrot.slane %v243, 2
    %v245 = vadd.f32 %v243, %v244
    %v246 = vrot.slane %v245, 1
    %v247 = vadd.f32 %v245, %v246
    %v248 = vmul.f32 %v240, %v42
    %v249 = vmul.f32 %v247, %v42
    %v250 = vsel %vm117, %v25, -inf
    %v251 = vrot.slane %v250, 4
    %v252 = vmax.f32 %v250, %v251
    %v253 = vrot.slane %v252, 2
    %v254 = vmax.f32 %v252, %v253
    %v255 = vrot.slane %v254, 1
    %v256 = vmax.f32 %v254, %v255
    %v257 = vsel %vm117, %v26, -inf
    %v258 = vrot.slane %v257, 4
    %v259 = vmax.f32 %v257, %v258
    %v260 = vrot.slane %v259, 2
    %v261 = vmax.f32 %v259, %v260
    %v262 = vrot.slane %v261, 1
    %v263 = vmax.f32 %v261, %v262
    %v264 = vxor.u32 %v248, 2147483648
    %v265 = vxor.u32 %v249, 2147483648
    %v266 = vmul.f32 %v264, 1.442695
    %v267 = vpow.pop %v266
    %v268 = vmul.f32 %v265, 1.442695
    %v269 = vpow.pop %v268
    %v270 = vadd.f32 %v267, 1.0
    %v271 = vadd.f32 %v269, 1.0
    %v272 = vrcp.pop %v270
    %v273 = vmul.f32 1.0, %v272
    %v274 = vrcp.pop %v271
    %v275 = vmul.f32 1.0, %v274
    %v276 = vxor.u32 %v256, 2147483648
    %v277 = vxor.u32 %v263, 2147483648
    %v278 = vmul.f32 %v276, 1.442695
    %v279 = vpow.pop %v278
    %v280 = vmul.f32 %v277, 1.442695
    %v281 = vpow.pop %v280
    %v282 = vadd.f32 %v279, 1.0
    %v283 = vadd.f32 %v281, 1.0
    %v284 = vrcp.pop %v282
    %v285 = vmul.f32 1.0, %v284
    %v286 = vrcp.pop %v283
    %v287 = vmul.f32 1.0, %v286
    %v288 = vmul.f32 %v273, %v285
    %v289 = vmul.f32 %v275, %v287
    %v290 = vmul.f32 %v288, 0.5
    %v291 = vmul.f32 %v289, 0.5
    %v292 = vmul.f32 %v226, %v290
    %v293 = vmul.f32 %v227, %v291
    %v296 = vrot.slane %v160, 2
    %v297 = vrot.slane %v161, 2
    %v302 = vrot.slane %v228, 4
    %v303 = vrot.slane %v229, 4
    %v308 = vrot.slane %v292, 6
    %v309 = vrot.slane %v293, 6
    %vm312 = vcmask 1041408
    %v313 = vsel %vm312, %v95, %v296
    %v314 = vsel %vm312, %v96, %v297
    %v315 = vsel %vm27, %v313, %v302
    %v316 = vsel %vm27, %v314, %v303
    %vm317 = vcmask 1045504
    %v318 = vsel %vm317, %v315, %v308
    %v319 = vsel %vm317, %v316, %v309
    %320 = vst [vmem:[#allocation5] sm:$0xff] %v318
    %321 = vst [vmem:[#allocation5 + $0x8] sm:$0xff] %v319
    // Predicated region
    $region10: #{tpu_custom_call.1} parent=1 // pred_check
      _
    $region11: #{tpu_custom_call.1} parent=1 // pred_check_branch
      %323 = sbr.rel (0) target = $region13
    $region12: #{tpu_custom_call.1} parent=1 // pred_region
      %s325 = ssub.s32 256, 256
      %326 = vsyncadd [#allocation4], %s325
      %s328 = sshll.u32 [#allocation5], 4
      %s329 = int_to_ptr.vmem [resolvable:$true] %s328
      %331 = dma.vmem_to_hbm [thread:$0]  %s329, 256, %s1, [#allocation4]
    $region13: #{tpu_custom_call.1} parent=1 // pred_fallthru
      _
    // Predicated region
    $region14: #{tpu_custom_call.1} parent=1 // pred_check
      _
    $region15: #{tpu_custom_call.1} parent=1 // pred_check_branch
      %333 = sbr.rel (0) target = $region17
    $region16: #{tpu_custom_call.1} parent=1 // pred_region
      %334 = dma.done [#allocation4], 256
    $region17: #{tpu_custom_call.1} parent=1 // pred_fallthru
      _
    %335 = vsyncpa [#allocation3], 1
    %336 = vsyncpa [#allocation4], 1

</llo_original>
